<compile_context>
chip_gen: v6e
topology: v6e:2x2x1
jax: 0.10.0
libtpu: 0.0.40
codegen_flags: <defaults>
</compile_context>

<pallas_src>
import functools
import math

import jax
import jax.numpy as jnp
from jax import lax
from jax.experimental import pallas as pl
from jax.experimental.pallas import tpu as pltpu


def _sign_block(m, i0, j0, shape, dtype):
    """S[i, j] = s_i * s_j for the block starting at (i0, j0), s = (1,..,1,-1)."""
    ii = lax.broadcasted_iota(jnp.int32, shape, 0) + i0
    jj = lax.broadcasted_iota(jnp.int32, shape, 1) + j0
    neg = jnp.logical_xor(ii == m - 1, jj == m - 1)
    return jnp.where(neg, -1.0, 1.0).astype(dtype)


def _frame_batched_kernel(x_ref, o_ref, *, m):
    # x_ref: (TB, m, m) -- TB whole matrices per grid step.
    x = x_ref[...]
    xt = jnp.swapaxes(x, -1, -2)                 # per-matrix transpose (XLU)
    s = _sign_block(m, 0, 0, (m, m), x.dtype)
    o_ref[...] = x - s[None, :, :] * xt


def _frame_tiled_kernel(x_ref, xswap_ref, o_ref, *, m, bm):
    # Large-m path: x_ref is block (b, bi, bj); xswap_ref is block (b, bj, bi)
    # of the same array, so its minor transpose is the (bi, bj) block of X^T.
    bi = pl.program_id(1)
    bj = pl.program_id(2)
    x = x_ref[...]                               # (1, bm, bm)
    xt = jnp.swapaxes(xswap_ref[...], -1, -2)    # (1, bm, bm) block of X^T
    s = _sign_block(m, bi * bm, bj * bm, (bm, bm), x.dtype)
    o_ref[...] = x - s[None, :, :] * xt


def hyperbolic_frame(X: jax.Array, *, tile_budget_bytes: int = 2 * 1024 * 1024) -> jax.Array:
    """A = X - g @ X^T @ g for X of shape (..., m, m)."""
    if X.ndim < 2:
        raise ValueError("weights has dimension < 2")
    *lead, m, m2 = X.shape
    if m != m2:
        raise ValueError("last two dims must be square")
    B = int(math.prod(lead))
    itemsize = jnp.dtype(X.dtype).itemsize
    Xf = X.reshape((B, m, m))

    # VMEM footprint of one (m, m) matrix after (8, 128) tiling / padding.
    pad_sub = -(-m // 8) * 8
    pad_lane = -(-m // 128) * 128
    per_mat_vmem = pad_sub * pad_lane * itemsize

    flops = 2 * B * m * m  # one multiply + one subtract per element

    if per_mat_vmem <= tile_budget_bytes or m % 128 != 0:
        # ---- small / medium m: whole matrices, many batched per grid step ----
        tb = max(1, min(B, tile_budget_bytes // max(per_mat_vmem, 1)))
        grid = (pl.cdiv(B, tb),)
        cparams = {"dimension_semantics": ("parallel",)}
        # ~4 live tiles (double-buffered in + out); request headroom if large.
        vmem_needed = 4 * tb * per_mat_vmem + (1 << 20)
        if vmem_needed > 16 * 1024 * 1024:
            cparams["vmem_limit_bytes"] = int(min(vmem_needed, 100 * 1024 * 1024))
        out = pl.pallas_call(
            functools.partial(_frame_batched_kernel, m=m),
            out_shape=jax.ShapeDtypeStruct((B, m, m), X.dtype),
            grid_spec=pltpu.PrefetchScalarGridSpec(
                num_scalar_prefetch=0,
                grid=grid,
                in_specs=[pl.BlockSpec((tb, m, m), lambda b: (b, 0, 0))],
                out_specs=pl.BlockSpec((tb, m, m), lambda b: (b, 0, 0)),
            ),
            compiler_params=pltpu.CompilerParams(**cparams),
            cost_estimate=pl.CostEstimate(
                flops=flops, transcendentals=0,
                bytes_accessed=2 * B * m * m * itemsize),
        )(Xf)
    else:
        # ---- large m: tile the matrix; two views (direct + swapped block) ----
        bm = 256 if m % 256 == 0 else 128
        grid = (B, m // bm, m // bm)
        out = pl.pallas_call(
            functools.partial(_frame_tiled_kernel, m=m, bm=bm),
            out_shape=jax.ShapeDtypeStruct((B, m, m), X.dtype),
            grid_spec=pltpu.PrefetchScalarGridSpec(
                num_scalar_prefetch=0,
                grid=grid,
                in_specs=[
                    pl.BlockSpec((1, bm, bm), lambda b, bi, bj: (b, bi, bj)),
                    pl.BlockSpec((1, bm, bm), lambda b, bi, bj: (b, bj, bi)),
                ],
                out_specs=pl.BlockSpec((1, bm, bm), lambda b, bi, bj: (b, bi, bj)),
            ),
            compiler_params=pltpu.CompilerParams(
                dimension_semantics=("parallel", "parallel", "parallel")),
            cost_estimate=pl.CostEstimate(
                flops=flops, transcendentals=0,
                bytes_accessed=3 * B * m * m * itemsize),
        )(Xf, Xf)

    return out.reshape(X.shape)


def _reference_frame(X: jnp.ndarray) -> jnp.ndarray:
    m = X.shape[-1]
    g = jnp.eye(m, dtype=X.dtype).at[m - 1, m - 1].set(-1.0)
    return X - g @ jnp.swapaxes(X, -1, -2) @ g


if __name__ == "__main__":
    key = jax.random.PRNGKey(0)

    # Small-m batched path (matches the module's (N, C, m, m) contract).
    N, C, m = 2, 4, 16
    X = jax.random.normal(key, (N, C, m, m), dtype=jnp.float32)
    out = hyperbolic_frame(X)
    jax.block_until_ready(out)
    ref = _reference_frame(X)
    assert out.shape == (N, C, m, m)
    assert jnp.allclose(out, ref, atol=1e-5, rtol=1e-5), "small-m path mismatch"

    # Large-m tiled two-view path (forced via a tiny tile budget, small shapes).
    X2 = jax.random.normal(jax.random.PRNGKey(1), (2, 384, 384), dtype=jnp.float32)
    out2 = hyperbolic_frame(X2, tile_budget_bytes=64 * 1024)
    jax.block_until_ready(out2)
    ref2 = _reference_frame(X2)
    assert jnp.allclose(out2, ref2, atol=1e-5, rtol=1e-5), "tiled path mismatch"

    print("KERNEL_OK")
</pallas_src>

<mosaic_0001>
module attributes {stable_mosaic.version = 11 : i64} {
  func.func @_frame_batched_kernel(%arg0: i32, %arg1: memref<8x16x16xf32, #tpu.memory_space<vmem>>, %arg2: memref<8x16x16xf32, #tpu.memory_space<vmem>>) attributes {dimension_semantics = [#tpu.dimension_semantics<parallel>], iteration_bounds = array<i64: 1>, scalar_prefetch = 0 : i64, scratch_operands = 0 : i64, tpu.core_type = #tpu.core_type<tc>, window_params = [{transform_indices = @transform_0, window_bounds = array<i64: 8, 16, 16>}, {transform_indices = @transform_1, window_bounds = array<i64: 8, 16, 16>}]} {
    %c0 = arith.constant 0 : index
    %c0_0 = arith.constant 0 : index
    %c0_1 = arith.constant 0 : index
    %0 = vector.load %arg1[%c0, %c0_0, %c0_1] : memref<8x16x16xf32, #tpu.memory_space<vmem>>, vector<8x16x16xf32>
    %1 = tpu.transpose %0, [0, 2, 1] : vector<8x16x16xf32> -> vector<8x16x16xf32>
    %2 = tpu.iota {dimensions = array<i32: 0>} : vector<16x16xi32>
    %c0_i32 = arith.constant 0 : i32
    %3 = vector.broadcast %c0_i32 : i32 to vector<16x16xi32>
    %4 = arith.addi %2, %3 : vector<16x16xi32>
    %5 = tpu.iota {dimensions = array<i32: 1>} : vector<16x16xi32>
    %c0_i32_2 = arith.constant 0 : i32
    %6 = vector.broadcast %c0_i32_2 : i32 to vector<16x16xi32>
    %7 = arith.addi %5, %6 : vector<16x16xi32>
    %c15_i32 = arith.constant 15 : i32
    %8 = vector.broadcast %c15_i32 : i32 to vector<16x16xi32>
    %9 = arith.cmpi eq, %4, %8 : vector<16x16xi32>
    %c15_i32_3 = arith.constant 15 : i32
    %10 = vector.broadcast %c15_i32_3 : i32 to vector<16x16xi32>
    %11 = arith.cmpi eq, %7, %10 : vector<16x16xi32>
    %12 = arith.xori %9, %11 : vector<16x16xi1>
    %cst = arith.constant -1.000000e+00 : f32
    %cst_4 = arith.constant 1.000000e+00 : f32
    %13 = vector.broadcast %cst : f32 to vector<16x16xf32>
    %14 = vector.broadcast %cst_4 : f32 to vector<16x16xf32>
    %15 = arith.select %12, %13, %14 : vector<16x16xi1>, vector<16x16xf32>
    %16 = vector.shape_cast %15 : vector<16x16xf32> to vector<1x16x16xf32>
    %17 = vector.broadcast %16 : vector<1x16x16xf32> to vector<8x16x16xf32>
    %18 = arith.mulf %17, %1 : vector<8x16x16xf32>
    %19 = arith.subf %0, %18 : vector<8x16x16xf32>
    %c0_5 = arith.constant 0 : index
    %c0_6 = arith.constant 0 : index
    %c0_7 = arith.constant 0 : index
    %20 = vector.load %arg2[%c0_5, %c0_6, %c0_7] : memref<8x16x16xf32, #tpu.memory_space<vmem>>, vector<8x16x16xf32>
    tpu.vector_store %arg2[%c0_5, %c0_6, %c0_7], %19 {strides = array<i32>} : memref<8x16x16xf32, #tpu.memory_space<vmem>>, vector<8x16x16xf32>,
    return
  }
  func.func @transform_0(%arg0: i32) -> (i32, i32, i32) {
    %c0_i32 = arith.constant 0 : i32
    %c0_i32_0 = arith.constant 0 : i32
    %c0_i32_1 = arith.constant 0 : i32
    return %arg0, %c0_i32, %c0_i32_0 : i32, i32, i32
  }
  func.func @transform_1(%arg0: i32) -> (i32, i32, i32) {
    %c0_i32 = arith.constant 0 : i32
    %c0_i32_0 = arith.constant 0 : i32
    %c0_i32_1 = arith.constant 0 : i32
    return %arg0, %c0_i32, %c0_i32_0 : i32, i32, i32
  }
}

</mosaic_0001>

<llo_original>
// kernel: tpu_custom_call.1
$region0: #{tpu_custom_call.1}
  #allocation0 [shape = 'u32[]', space=smem, size = 0x4, offset = 0x4, fixed_abs, tag = 'smem constant byte address 0x4 - core index']
  #allocation1 [shape = 'u32[144,128]{1,0:T(1,128)}', space=vmem, size = 0x12000, scoped, tag = 'internal scratch']
  %s0 = inlined_call_operand.hbm [shape: f32[8,16,16], index: 0, kind: input, shape index: {}]
  %s1 = inlined_call_operand.hbm [shape: f32[8,16,16], index: 1, kind: output, shape index: {}]
  %s2 = sld [smem:[#allocation0]]
  $region18: #{tpu_custom_call.1} parent=0
    _
  %s4 = ssub.s32 1, %s2
  %s5 = scalar_select 0, %s4, %s2
  $region1: #{tpu_custom_call.1} parent=0
    #allocation2 [shape = 'u8[65536]{0}', space=vmem, size = 0x10000, scoped, tag = 'input window, operand 0, single buffered']
    #allocation3 [shape = 's32[1]{0}', space=sflag, size = 0x4, scoped, tag = 'scoped memory for tpu_custom_call.1']
    #allocation4 [shape = 's32[1]{0}', space=sflag, size = 0x4, scoped, tag = 'scoped memory for tpu_custom_call.1']
    #allocation5 [shape = 'u8[65536]{0}', space=vmem, size = 0x10000, scoped, tag = 'output window, operand 0, single buffered']
    %6 = vsyncpa [#allocation3], 0
    %7 = vsyncpa [#allocation4], 0
    // Predicated region
    $region2: #{tpu_custom_call.1} parent=1 // pred_check
      _
    $region3: #{tpu_custom_call.1} parent=1 // pred_check_branch
      %9 = sbr.rel (0) target = $region5
    $region4: #{tpu_custom_call.1} parent=1 // pred_region
      %s11 = ssub.s32 2048, 2048
      %12 = vsyncadd [#allocation3], %s11
      %s13 = sshll.u32 [#allocation2], 4
      %s14 = int_to_ptr.vmem [resolvable:$true] %s13
      %19 = dma.hbm_to_vmem [thread:$0]  %s0, 2048, %s14, [#allocation3], 128, 128, 8
    $region5: #{tpu_custom_call.1} parent=1 // pred_fallthru
      _
    // Predicated region
    $region6: #{tpu_custom_call.1} parent=1 // pred_check
      _
    $region7: #{tpu_custom_call.1} parent=1 // pred_check_branch
      %21 = sbr.rel (0) target = $region9
    $region8: #{tpu_custom_call.1} parent=1 // pred_region
      %22 = dma.done [#allocation3], 2048
    $region9: #{tpu_custom_call.1} parent=1 // pred_fallthru
      _
    %v23 = vld [vmem:[#allocation2] sm:$0xff]
    %v24 = vld [vmem:[#allocation2 + $0x8] sm:$0xff]
    %v25 = vld [vmem:[#allocation2 + $0x10] sm:$0xff]
    %v26 = vld [vmem:[#allocation2 + $0x18] sm:$0xff]
    %v27 = vld [vmem:[#allocation2 + $0x20] sm:$0xff]
    %v28 = vld [vmem:[#allocation2 + $0x28] sm:$0xff]
    %v29 = vld [vmem:[#allocation2 + $0x30] sm:$0xff]
    %v30 = vld [vmem:[#allocation2 + $0x38] sm:$0xff]
    %v31 = vld [vmem:[#allocation2 + $0x40] sm:$0xff]
    %v32 = vld [vmem:[#allocation2 + $0x48] sm:$0xff]
    %v33 = vld [vmem:[#allocation2 + $0x50] sm:$0xff]
    %v34 = vld [vmem:[#allocation2 + $0x58] sm:$0xff]
    %v35 = vld [vmem:[#allocation2 + $0x60] sm:$0xff]
    %v36 = vld [vmem:[#allocation2 + $0x68] sm:$0xff]
    %v37 = vld [vmem:[#allocation2 + $0x70] sm:$0xff]
    %v38 = vld [vmem:[#allocation2 + $0x78] sm:$0xff]
    %39 = vxpose.xlu0.b32.start [1/16] %v23, 128
    %40 = vxpose.xlu0.b32.cont [2/16] %v24, 128
    %41 = vxpose.xlu0.b32.cont [3/16] 0.0, 128
    %42 = vxpose.xlu0.b32.cont [4/16] 0.0, 128
    %43 = vxpose.xlu0.b32.cont [5/16] 0.0, 128
    %44 = vxpose.xlu0.b32.cont [6/16] 0.0, 128
    %45 = vxpose.xlu0.b32.cont [7/16] 0.0, 128
    %46 = vxpose.xlu0.b32.cont [8/16] 0.0, 128
    %47 = vxpose.xlu0.b32.cont [9/16] 0.0, 128
    %48 = vxpose.xlu0.b32.cont [10/16] 0.0, 128
    %49 = vxpose.xlu0.b32.cont [11/16] 0.0, 128
    %50 = vxpose.xlu0.b32.cont [12/16] 0.0, 128
    %51 = vxpose.xlu0.b32.cont [13/16] 0.0, 128
    %52 = vxpose.xlu0.b32.cont [14/16] 0.0, 128
    %53 = vxpose.xlu0.b32.cont [15/16] 0.0, 128
    %54 = vxpose.xlu0.b32.end [16/16] 0.0, 128
    %v55 = vpop.trf.xlu0
    %v56 = vpop.trf.xlu0
    %v57 = vpop.trf.xlu0
    %v58 = vpop.trf.xlu0
    %v59 = vpop.trf.xlu0
    %v60 = vpop.trf.xlu0
    %v61 = vpop.trf.xlu0
    %v62 = vpop.trf.xlu0
    %v63 = vpop.trf.xlu0
    %v64 = vpop.trf.xlu0
    %v65 = vpop.trf.xlu0
    %v66 = vpop.trf.xlu0
    %v67 = vpop.trf.xlu0
    %v68 = vpop.trf.xlu0
    %v69 = vpop.trf.xlu0
    %v70 = vpop.trf.xlu0
    %71 = vxpose.xlu0.b32.start [1/16] %v25, 128
    %72 = vxpose.xlu0.b32.cont [2/16] %v26, 128
    %73 = vxpose.xlu0.b32.cont [3/16] 0.0, 128
    %74 = vxpose.xlu0.b32.cont [4/16] 0.0, 128
    %75 = vxpose.xlu0.b32.cont [5/16] 0.0, 128
    %76 = vxpose.xlu0.b32.cont [6/16] 0.0, 128
    %77 = vxpose.xlu0.b32.cont [7/16] 0.0, 128
    %78 = vxpose.xlu0.b32.cont [8/16] 0.0, 128
    %79 = vxpose.xlu0.b32.cont [9/16] 0.0, 128
    %80 = vxpose.xlu0.b32.cont [10/16] 0.0, 128
    %81 = vxpose.xlu0.b32.cont [11/16] 0.0, 128
    %82 = vxpose.xlu0.b32.cont [12/16] 0.0, 128
    %83 = vxpose.xlu0.b32.cont [13/16] 0.0, 128
    %84 = vxpose.xlu0.b32.cont [14/16] 0.0, 128
    %85 = vxpose.xlu0.b32.cont [15/16] 0.0, 128
    %86 = vxpose.xlu0.b32.end [16/16] 0.0, 128
    %v87 = vpop.trf.xlu0
    %v88 = vpop.trf.xlu0
    %v89 = vpop.trf.xlu0
    %v90 = vpop.trf.xlu0
    %v91 = vpop.trf.xlu0
    %v92 = vpop.trf.xlu0
    %v93 = vpop.trf.xlu0
    %v94 = vpop.trf.xlu0
    %v95 = vpop.trf.xlu0
    %v96 = vpop.trf.xlu0
    %v97 = vpop.trf.xlu0
    %v98 = vpop.trf.xlu0
    %v99 = vpop.trf.xlu0
    %v100 = vpop.trf.xlu0
    %v101 = vpop.trf.xlu0
    %v102 = vpop.trf.xlu0
    %103 = vxpose.xlu0.b32.start [1/16] %v27, 128
    %104 = vxpose.xlu0.b32.cont [2/16] %v28, 128
    %105 = vxpose.xlu0.b32.cont [3/16] 0.0, 128
    %106 = vxpose.xlu0.b32.cont [4/16] 0.0, 128
    %107 = vxpose.xlu0.b32.cont [5/16] 0.0, 128
    %108 = vxpose.xlu0.b32.cont [6/16] 0.0, 128
    %109 = vxpose.xlu0.b32.cont [7/16] 0.0, 128
    %110 = vxpose.xlu0.b32.cont [8/16] 0.0, 128
    %111 = vxpose.xlu0.b32.cont [9/16] 0.0, 128
    %112 = vxpose.xlu0.b32.cont [10/16] 0.0, 128
    %113 = vxpose.xlu0.b32.cont [11/16] 0.0, 128
    %114 = vxpose.xlu0.b32.cont [12/16] 0.0, 128
    %115 = vxpose.xlu0.b32.cont [13/16] 0.0, 128
    %116 = vxpose.xlu0.b32.cont [14/16] 0.0, 128
    %117 = vxpose.xlu0.b32.cont [15/16] 0.0, 128
    %118 = vxpose.xlu0.b32.end [16/16] 0.0, 128
    %v119 = vpop.trf.xlu0
    %v120 = vpop.trf.xlu0
    %v121 = vpop.trf.xlu0
    %v122 = vpop.trf.xlu0
    %v123 = vpop.trf.xlu0
    %v124 = vpop.trf.xlu0
    %v125 = vpop.trf.xlu0
    %v126 = vpop.trf.xlu0
    %v127 = vpop.trf.xlu0
    %v128 = vpop.trf.xlu0
    %v129 = vpop.trf.xlu0
    %v130 = vpop.trf.xlu0
    %v131 = vpop.trf.xlu0
    %v132 = vpop.trf.xlu0
    %v133 = vpop.trf.xlu0
    %v134 = vpop.trf.xlu0
    %135 = vxpose.xlu0.b32.start [1/16] %v29, 128
    %136 = vxpose.xlu0.b32.cont [2/16] %v30, 128
    %137 = vxpose.xlu0.b32.cont [3/16] 0.0, 128
    %138 = vxpose.xlu0.b32.cont [4/16] 0.0, 128
    %139 = vxpose.xlu0.b32.cont [5/16] 0.0, 128
    %140 = vxpose.xlu0.b32.cont [6/16] 0.0, 128
    %141 = vxpose.xlu0.b32.cont [7/16] 0.0, 128
    %142 = vxpose.xlu0.b32.cont [8/16] 0.0, 128
    %143 = vxpose.xlu0.b32.cont [9/16] 0.0, 128
    %144 = vxpose.xlu0.b32.cont [10/16] 0.0, 128
    %145 = vxpose.xlu0.b32.cont [11/16] 0.0, 128
    %146 = vxpose.xlu0.b32.cont [12/16] 0.0, 128
    %147 = vxpose.xlu0.b32.cont [13/16] 0.0, 128
    %148 = vxpose.xlu0.b32.cont [14/16] 0.0, 128
    %149 = vxpose.xlu0.b32.cont [15/16] 0.0, 128
    %150 = vxpose.xlu0.b32.end [16/16] 0.0, 128
    %v151 = vpop.trf.xlu0
    %v152 = vpop.trf.xlu0
    %v153 = vpop.trf.xlu0
    %v154 = vpop.trf.xlu0
    %v155 = vpop.trf.xlu0
    %v156 = vpop.trf.xlu0
    %v157 = vpop.trf.xlu0
    %v158 = vpop.trf.xlu0
    %v159 = vpop.trf.xlu0
    %v160 = vpop.trf.xlu0
    %v161 = vpop.trf.xlu0
    %v162 = vpop.trf.xlu0
    %v163 = vpop.trf.xlu0
    %v164 = vpop.trf.xlu0
    %v165 = vpop.trf.xlu0
    %v166 = vpop.trf.xlu0
    %167 = vxpose.xlu0.b32.start [1/16] %v31, 128
    %168 = vxpose.xlu0.b32.cont [2/16] %v32, 128
    %169 = vxpose.xlu0.b32.cont [3/16] 0.0, 128
    %170 = vxpose.xlu0.b32.cont [4/16] 0.0, 128
    %171 = vxpose.xlu0.b32.cont [5/16] 0.0, 128
    %172 = vxpose.xlu0.b32.cont [6/16] 0.0, 128
    %173 = vxpose.xlu0.b32.cont [7/16] 0.0, 128
    %174 = vxpose.xlu0.b32.cont [8/16] 0.0, 128
    %175 = vxpose.xlu0.b32.cont [9/16] 0.0, 128
    %176 = vxpose.xlu0.b32.cont [10/16] 0.0, 128
    %177 = vxpose.xlu0.b32.cont [11/16] 0.0, 128
    %178 = vxpose.xlu0.b32.cont [12/16] 0.0, 128
    %179 = vxpose.xlu0.b32.cont [13/16] 0.0, 128
    %180 = vxpose.xlu0.b32.cont [14/16] 0.0, 128
    %181 = vxpose.xlu0.b32.cont [15/16] 0.0, 128
    %182 = vxpose.xlu0.b32.end [16/16] 0.0, 128
    %v183 = vpop.trf.xlu0
    %v184 = vpop.trf.xlu0
    %v185 = vpop.trf.xlu0
    %v186 = vpop.trf.xlu0
    %v187 = vpop.trf.xlu0
    %v188 = vpop.trf.xlu0
    %v189 = vpop.trf.xlu0
    %v190 = vpop.trf.xlu0
    %v191 = vpop.trf.xlu0
    %v192 = vpop.trf.xlu0
    %v193 = vpop.trf.xlu0
    %v194 = vpop.trf.xlu0
    %v195 = vpop.trf.xlu0
    %v196 = vpop.trf.xlu0
    %v197 = vpop.trf.xlu0
    %v198 = vpop.trf.xlu0
    %199 = vxpose.xlu0.b32.start [1/16] %v33, 128
    %200 = vxpose.xlu0.b32.cont [2/16] %v34, 128
    %201 = vxpose.xlu0.b32.cont [3/16] 0.0, 128
    %202 = vxpose.xlu0.b32.cont [4/16] 0.0, 128
    %203 = vxpose.xlu0.b32.cont [5/16] 0.0, 128
    %204 = vxpose.xlu0.b32.cont [6/16] 0.0, 128
    %205 = vxpose.xlu0.b32.cont [7/16] 0.0, 128
    %206 = vxpose.xlu0.b32.cont [8/16] 0.0, 128
    %207 = vxpose.xlu0.b32.cont [9/16] 0.0, 128
    %208 = vxpose.xlu0.b32.cont [10/16] 0.0, 128
    %209 = vxpose.xlu0.b32.cont [11/16] 0.0, 128
    %210 = vxpose.xlu0.b32.cont [12/16] 0.0, 128
    %211 = vxpose.xlu0.b32.cont [13/16] 0.0, 128
    %212 = vxpose.xlu0.b32.cont [14/16] 0.0, 128
    %213 = vxpose.xlu0.b32.cont [15/16] 0.0, 128
    %214 = vxpose.xlu0.b32.end [16/16] 0.0, 128
    %v215 = vpop.trf.xlu0
    %v216 = vpop.trf.xlu0
    %v217 = vpop.trf.xlu0
    %v218 = vpop.trf.xlu0
    %v219 = vpop.trf.xlu0
    %v220 = vpop.trf.xlu0
    %v221 = vpop.trf.xlu0
    %v222 = vpop.trf.xlu0
    %v223 = vpop.trf.xlu0
    %v224 = vpop.trf.xlu0
    %v225 = vpop.trf.xlu0
    %v226 = vpop.trf.xlu0
    %v227 = vpop.trf.xlu0
    %v228 = vpop.trf.xlu0
    %v229 = vpop.trf.xlu0
    %v230 = vpop.trf.xlu0
    %231 = vxpose.xlu0.b32.start [1/16] %v35, 128
    %232 = vxpose.xlu0.b32.cont [2/16] %v36, 128
    %233 = vxpose.xlu0.b32.cont [3/16] 0.0, 128
    %234 = vxpose.xlu0.b32.cont [4/16] 0.0, 128
    %235 = vxpose.xlu0.b32.cont [5/16] 0.0, 128
    %236 = vxpose.xlu0.b32.cont [6/16] 0.0, 128
    %237 = vxpose.xlu0.b32.cont [7/16] 0.0, 128
    %238 = vxpose.xlu0.b32.cont [8/16] 0.0, 128
    %239 = vxpose.xlu0.b32.cont [9/16] 0.0, 128
    %240 = vxpose.xlu0.b32.cont [10/16] 0.0, 128
    %241 = vxpose.xlu0.b32.cont [11/16] 0.0, 128
    %242 = vxpose.xlu0.b32.cont [12/16] 0.0, 128
    %243 = vxpose.xlu0.b32.cont [13/16] 0.0, 128
    %244 = vxpose.xlu0.b32.cont [14/16] 0.0, 128
    %245 = vxpose.xlu0.b32.cont [15/16] 0.0, 128
    %246 = vxpose.xlu0.b32.end [16/16] 0.0, 128
    %v247 = vpop.trf.xlu0
    %v248 = vpop.trf.xlu0
    %v249 = vpop.trf.xlu0
    %v250 = vpop.trf.xlu0
    %v251 = vpop.trf.xlu0
    %v252 = vpop.trf.xlu0
    %v253 = vpop.trf.xlu0
    %v254 = vpop.trf.xlu0
    %v255 = vpop.trf.xlu0
    %v256 = vpop.trf.xlu0
    %v257 = vpop.trf.xlu0
    %v258 = vpop.trf.xlu0
    %v259 = vpop.trf.xlu0
    %v260 = vpop.trf.xlu0
    %v261 = vpop.trf.xlu0
    %v262 = vpop.trf.xlu0
    %263 = vxpose.xlu0.b32.start [1/16] %v37, 128
    %264 = vxpose.xlu0.b32.cont [2/16] %v38, 128
    %265 = vxpose.xlu0.b32.cont [3/16] 0.0, 128
    %266 = vxpose.xlu0.b32.cont [4/16] 0.0, 128
    %267 = vxpose.xlu0.b32.cont [5/16] 0.0, 128
    %268 = vxpose.xlu0.b32.cont [6/16] 0.0, 128
    %269 = vxpose.xlu0.b32.cont [7/16] 0.0, 128
    %270 = vxpose.xlu0.b32.cont [8/16] 0.0, 128
    %271 = vxpose.xlu0.b32.cont [9/16] 0.0, 128
    %272 = vxpose.xlu0.b32.cont [10/16] 0.0, 128
    %273 = vxpose.xlu0.b32.cont [11/16] 0.0, 128
    %274 = vxpose.xlu0.b32.cont [12/16] 0.0, 128
    %275 = vxpose.xlu0.b32.cont [13/16] 0.0, 128
    %276 = vxpose.xlu0.b32.cont [14/16] 0.0, 128
    %277 = vxpose.xlu0.b32.cont [15/16] 0.0, 128
    %278 = vxpose.xlu0.b32.end [16/16] 0.0, 128
    %v279 = vpop.trf.xlu0
    %v280 = vpop.trf.xlu0
    %v281 = vpop.trf.xlu0
    %v282 = vpop.trf.xlu0
    %v283 = vpop.trf.xlu0
    %v284 = vpop.trf.xlu0
    %v285 = vpop.trf.xlu0
    %v286 = vpop.trf.xlu0
    %v287 = vpop.trf.xlu0
    %v288 = vpop.trf.xlu0
    %v289 = vpop.trf.xlu0
    %v290 = vpop.trf.xlu0
    %v291 = vpop.trf.xlu0
    %v292 = vpop.trf.xlu0
    %v293 = vpop.trf.xlu0
    %v294 = vpop.trf.xlu0
    %v295 = vlaneseq
    %v296 = vshrl.u32 %v295, 7
    %v297 = vadd.s32 %v296, 8
    %v298 = vlaneseq
    %v299 = vand.u32 %v298, 127
    %vm300 = vcmp.eq.s32.totalorder %v296, 15
    %vm301 = vcmp.eq.s32.totalorder %v297, 15
    %vm302 = vcmp.eq.s32.totalorder %v299, 15
    %vm303 = vmxor %vm300, %vm302
    %vm304 = vmxor %vm301, %vm302
    %v305 = vsel %vm303, -1.0, 1.0
    %v306 = vsel %vm304, -1.0, 1.0
    %v307 = vmul.f32 %v305, %v55
    %v308 = vmul.f32 %v306, %v56
    %v309 = vmul.f32 %v305, %v87
    %v310 = vmul.f32 %v306, %v88
    %v311 = vmul.f32 %v305, %v119
    %v312 = vmul.f32 %v306, %v120
    %v313 = vmul.f32 %v305, %v151
    %v314 = vmul.f32 %v306, %v152
    %v315 = vmul.f32 %v305, %v183
    %v316 = vmul.f32 %v306, %v184
    %v317 = vmul.f32 %v305, %v215
    %v318 = vmul.f32 %v306, %v216
    %v319 = vmul.f32 %v305, %v247
    %v320 = vmul.f32 %v306, %v248
    %v321 = vmul.f32 %v305, %v279
    %v322 = vmul.f32 %v306, %v280
    %v323 = vsub.f32 %v23, %v307
    %v324 = vsub.f32 %v24, %v308
    %v325 = vsub.f32 %v25, %v309
    %v326 = vsub.f32 %v26, %v310
    %v327 = vsub.f32 %v27, %v311
    %v328 = vsub.f32 %v28, %v312
    %v329 = vsub.f32 %v29, %v313
    %v330 = vsub.f32 %v30, %v314
    %v331 = vsub.f32 %v31, %v315
    %v332 = vsub.f32 %v32, %v316
    %v333 = vsub.f32 %v33, %v317
    %v334 = vsub.f32 %v34, %v318
    %v335 = vsub.f32 %v35, %v319
    %v336 = vsub.f32 %v36, %v320
    %v337 = vsub.f32 %v37, %v321
    %v338 = vsub.f32 %v38, %v322
    %vm339 = vcmask 130048
    %340 = vst.msk [vmem:[#allocation5] sm:$0xff] %vm339, %v323
    %341 = vst.msk [vmem:[#allocation5 + $0x8] sm:$0xff] %vm339, %v324
    %342 = vst.msk [vmem:[#allocation5 + $0x10] sm:$0xff] %vm339, %v325
    %343 = vst.msk [vmem:[#allocation5 + $0x18] sm:$0xff] %vm339, %v326
    %344 = vst.msk [vmem:[#allocation5 + $0x20] sm:$0xff] %vm339, %v327
    %345 = vst.msk [vmem:[#allocation5 + $0x28] sm:$0xff] %vm339, %v328
    %346 = vst.msk [vmem:[#allocation5 + $0x30] sm:$0xff] %vm339, %v329
    %347 = vst.msk [vmem:[#allocation5 + $0x38] sm:$0xff] %vm339, %v330
    %348 = vst.msk [vmem:[#allocation5 + $0x40] sm:$0xff] %vm339, %v331
    %349 = vst.msk [vmem:[#allocation5 + $0x48] sm:$0xff] %vm339, %v332
    %350 = vst.msk [vmem:[#allocation5 + $0x50] sm:$0xff] %vm339, %v333
    %351 = vst.msk [vmem:[#allocation5 + $0x58] sm:$0xff] %vm339, %v334
    %352 = vst.msk [vmem:[#allocation5 + $0x60] sm:$0xff] %vm339, %v335
    %353 = vst.msk [vmem:[#allocation5 + $0x68] sm:$0xff] %vm339, %v336
    %354 = vst.msk [vmem:[#allocation5 + $0x70] sm:$0xff] %vm339, %v337
    %355 = vst.msk [vmem:[#allocation5 + $0x78] sm:$0xff] %vm339, %v338
    // Predicated region
    $region10: #{tpu_custom_call.1} parent=1 // pred_check
      _
    $region11: #{tpu_custom_call.1} parent=1 // pred_check_branch
      %357 = sbr.rel (0) target = $region13
    $region12: #{tpu_custom_call.1} parent=1 // pred_region
      %s359 = ssub.s32 2048, 2048
      %360 = vsyncadd [#allocation4], %s359
      %s361 = sshll.u32 [#allocation5], 4
      %s362 = int_to_ptr.vmem [resolvable:$true] %s361
      %367 = dma.vmem_to_hbm [thread:$0]  %s362, 2048, %s1, [#allocation4], 128, 128, 8
    $region13: #{tpu_custom_call.1} parent=1 // pred_fallthru
      _
    // Predicated region
    $region14: #{tpu_custom_call.1} parent=1 // pred_check
      _
    $region15: #{tpu_custom_call.1} parent=1 // pred_check_branch
      %369 = sbr.rel (0) target = $region17
    $region16: #{tpu_custom_call.1} parent=1 // pred_region
      %370 = dma.done [#allocation4], 2048
    $region17: #{tpu_custom_call.1} parent=1 // pred_fallthru
      _
    %371 = vsyncpa [#allocation3], 1
    %372 = vsyncpa [#allocation4], 1

</llo_original>
